<compile_context>
chip_gen: v6e
topology: v6e:2x2x1
jax: 0.10.0
libtpu: 0.0.40
codegen_flags: <defaults>
</compile_context>

<pallas_src>
import jax
import jax.numpy as jnp
from jax import lax
from jax.experimental import pallas as pl
from jax.experimental.pallas import tpu as pltpu

# ----- static module constants (from the PyTorch spec) ----------------------
DIST_BINS = (1, 2, 3, 4, 8, 16, 32, 64)   # Distance.bins
DIST_VOCAB = len(DIST_BINS) + 1           # 9
GENRE_VOCAB = 7 + 1                       # 7 genres + padding_idx 0
SPEAKER_VOCAB = 3                         # {unknown=0, same=1, diff=2}, padding_idx 0
PHI_VOCAB = DIST_VOCAB + GENRE_VOCAB + SPEAKER_VOCAB   # 20 stacked table rows


def _round_up(n, m):
    return ((n + m - 1) // m) * m


def _pad_rows(x, n_pad):
    n = x.shape[0]
    if n == n_pad:
        return x
    pad = jnp.zeros((n_pad - n,) + x.shape[1:], dtype=x.dtype)
    return jnp.concatenate([x, pad], axis=0)


def _pick_tile(n, *, max_single=2048, multi=512):
    """Single fat grid step when it fits comfortably in VMEM; otherwise 512-row
    tiles (multiples of 128, required by the lane-dense (1, TILE) output block).
    TODO(synk): on v7x prefer an even number of 'parallel' steps so both
    TensorCores get balanced work."""
    n_pad = _round_up(max(n, 1), 128)
    if n_pad <= max_single:
        return n_pad, n_pad
    n_pad = _round_up(n, multi)
    return n_pad, multi


# ============================================================================
# Generic Score MLP kernel (unary mention scores over g_i)
# ============================================================================
def _score_mlp_kernel(x_ref, w1_ref, w2_ref, bpack_ref, b3_ref, out_ref):
    # bpack rows: [b1; b2; w3]
    h1 = jnp.dot(x_ref[...], w1_ref[...], preferred_element_type=jnp.float32)
    h1 = jnp.maximum(h1 + bpack_ref[0:1, :], 0.0)
    h2 = jnp.dot(h1, w2_ref[...], preferred_element_type=jnp.float32)
    h2 = jnp.maximum(h2 + bpack_ref[1:2, :], 0.0)
    # Final Linear(H, 1) computed as (1,H) x (T,H)^T -> (1,T): the score row is
    # produced lane-dense, so the store is an unmasked vst (no (T,1) column).
    s = lax.dot_general(bpack_ref[2:3, :], h2, (((1,), (1,)), ((), ())),
                        preferred_element_type=jnp.float32)
    out_ref[...] = s + b3_ref[...]
    # TODO(synk): nn.Dropout(0.2) between layers is identity at inference; omitted.


def score_forward(x, params, *, max_single_tile=2048, multi_tile=512):
    """Score module forward: x (N, D) -> scores (N, 1)."""
    w1, b1, w2, b2, w3_row, b3 = params
    n, g = x.shape
    h = w2.shape[0]
    n_pad, tile = _pick_tile(n, max_single=max_single_tile, multi=multi_tile)
    x_p = _pad_rows(x, n_pad)
    bpack = jnp.concatenate([b1, b2, w3_row], axis=0)          # (3, H)

    out = pl.pallas_call(
        _score_mlp_kernel,
        out_shape=jax.ShapeDtypeStruct((1, n_pad), jnp.float32),
        grid=(n_pad // tile,),
        in_specs=[
            pl.BlockSpec((tile, g), lambda i: (i, 0)),          # x tile
            pl.BlockSpec((g, h), lambda i: (0, 0)),             # W1 (resident)
            pl.BlockSpec((h, h), lambda i: (0, 0)),             # W2 (resident)
            pl.BlockSpec((3, h), lambda i: (0, 0)),             # [b1; b2; w3]
            pl.BlockSpec((1, 1), lambda i: (0, 0)),             # b3
        ],
        out_specs=pl.BlockSpec((1, tile), lambda i: (0, i)),    # lane-dense row
        compiler_params=pltpu.CompilerParams(dimension_semantics=("parallel",)),
    )(x_p, w1, w2, bpack, b3)
    return out[0, :n].reshape(n, 1)


# ============================================================================
# Fused PairwiseScore kernel
# ============================================================================
def _pairwise_kernel(ig_ref, jg_ref, ids_ref, base_ref,
                     w1s_ref, table_ref, bpack_ref, w2_ref, out_ref):
    ig = ig_ref[...]                                            # (T, G)
    jg = jg_ref[...]                                            # (T, G)

    # First Linear of Score(gij_dim) as partial matmuls over the concat blocks
    # [i_g | j_g | i_g*j_g | phi] — the (T, gij_dim) feature matrix never exists.
    h1 = jnp.dot(ig, w1s_ref[0], preferred_element_type=jnp.float32)
    h1 += jnp.dot(jg, w1s_ref[1], preferred_element_type=jnp.float32)
    h1 += jnp.dot(ig * jg, w1s_ref[2], preferred_element_type=jnp.float32)

    # phi (distance / genre / speaker) lookup fused into a single multi-hot MXU
    # matmul against the stacked, W1-premultiplied table.  ids already carry the
    # row offsets (dist_bin | 9+genre | 17+speaker); padding rows of the genre /
    # speaker tables are exactly zero so hitting them adds nothing.
    ids = ids_ref[...]                                          # (T, 3) int32
    col = lax.broadcasted_iota(jnp.int32, (ids.shape[0], PHI_VOCAB), 1)
    mh = (col == ids[:, 0:1]) | (col == ids[:, 1:2]) | (col == ids[:, 2:3])
    h1 += jnp.dot(mh.astype(jnp.float32), table_ref[...],
                  preferred_element_type=jnp.float32)

    # Remaining Score MLP; final Linear(H,1) as (1,H) x (T,H)^T -> lane-dense row.
    h1 = jnp.maximum(h1 + bpack_ref[0:1, :], 0.0)
    h2 = jnp.dot(h1, w2_ref[...], preferred_element_type=jnp.float32)
    h2 = jnp.maximum(h2 + bpack_ref[1:2, :], 0.0)
    s_ij = lax.dot_general(bpack_ref[2:3, :], h2, (((1,), (1,)), ((), ())),
                           preferred_element_type=jnp.float32)  # (1, T)

    out_ref[...] = s_ij + base_ref[...]        # base = s_i + s_j + b3 (lane-dense)
    # TODO(synk): Dropout(0.2) layers (Score / Distance / Genre / Speaker) are
    # inference identity; omitted.


def pairwise_coref_forward(g_i, mention_scores, mention_ids, antecedent_ids,
                           raw_distances, genre_ids, speaker_ids, pw,
                           *, distance_dim=20, genre_dim=20, speaker_dim=20,
                           max_single_tile=2048, multi_tile=512):
    """PairwiseScore forward: returns coref_scores (P, 1) = s_i + s_j + s_ij."""
    gi_dim = g_i.shape[1]
    h = pw["w2"].shape[0]

    # Split the first Linear's weight by concat blocks (done once, outside the grid).
    w1 = pw["w1_full"]
    o = 0
    w1i = w1[o:o + gi_dim]; o += gi_dim
    w1j = w1[o:o + gi_dim]; o += gi_dim
    w1p = w1[o:o + gi_dim]; o += gi_dim
    w1d = w1[o:o + distance_dim]; o += distance_dim
    w1g = w1[o:o + genre_dim]; o += genre_dim
    w1s = w1[o:o + speaker_dim]

    w1_stack = jnp.stack([w1i, w1j, w1p], axis=0)               # (3, G, H)
    # Fuse each tiny embedding table into its W1 slice and stack: rows
    # [0:9)=distance, [9:17)=genre (row 9 is the zero padding row),
    # [17:20)=speaker (row 17 is the zero padding row).
    table = jnp.concatenate([pw["e_dist"] @ w1d,
                             pw["e_genre"] @ w1g,
                             pw["e_spk"] @ w1s], axis=0)        # (PHI_VOCAB, H)
    bpack = jnp.concatenate([pw["b1"], pw["b2"], pw["w3_row"]], axis=0)   # (3, H)

    p = mention_ids.shape[0]
    p_pad, tile = _pick_tile(p, max_single=max_single_tile, multi=multi_tile)

    # Row gathers of g_i / mention scores stay in plain JAX (XLA gather); all
    # downstream math is fused into one pallas_call.
    # TODO(synk): for very large pair counts, move the gather in-kernel
    # (scalar-prefetch ids + VMEM-resident g_i) to avoid the ig/jg HBM round trip.
    ig = _pad_rows(jnp.take(g_i, mention_ids, axis=0), p_pad)
    jg = _pad_rows(jnp.take(g_i, antecedent_ids, axis=0), p_pad)

    ms = mention_scores.reshape(-1)
    base = (jnp.take(ms, mention_ids) + jnp.take(ms, antecedent_ids)
            + pw["b3"].reshape(()))
    base_row = _pad_rows(base.astype(jnp.float32), p_pad).reshape(1, p_pad)

    # Distance.stoi binning + offsets into the stacked table, packed as (P, 3).
    bins = jnp.asarray(DIST_BINS, jnp.int32)
    dist_bin = jnp.sum(raw_distances.astype(jnp.int32)[:, None] >= bins[None, :],
                       axis=1).astype(jnp.int32)
    ids = jnp.stack(
        [dist_bin,
         DIST_VOCAB + genre_ids.astype(jnp.int32),
         DIST_VOCAB + GENRE_VOCAB + speaker_ids.astype(jnp.int32)], axis=1)
    ids_p = _pad_rows(ids, p_pad)

    out = pl.pallas_call(
        _pairwise_kernel,
        out_shape=jax.ShapeDtypeStruct((1, p_pad), jnp.float32),
        grid=(p_pad // tile,),
        in_specs=[
            pl.BlockSpec((tile, gi_dim), lambda i: (i, 0)),      # i_g
            pl.BlockSpec((tile, gi_dim), lambda i: (i, 0)),      # j_g
            pl.BlockSpec((tile, 3), lambda i: (i, 0)),           # packed phi ids
            pl.BlockSpec((1, tile), lambda i: (0, i)),           # s_i + s_j + b3
            pl.BlockSpec((3, gi_dim, h), lambda i: (0, 0, 0)),   # stacked W1 blocks
            pl.BlockSpec((PHI_VOCAB, h), lambda i: (0, 0)),      # fused phi table
            pl.BlockSpec((3, h), lambda i: (0, 0)),              # [b1; b2; w3]
            pl.BlockSpec((h, h), lambda i: (0, 0)),              # W2
        ],
        out_specs=pl.BlockSpec((1, tile), lambda i: (0, i)),     # lane-dense row
        compiler_params=pltpu.CompilerParams(dimension_semantics=("parallel",)),
    )(ig, jg, ids_p, base_row, w1_stack, table, bpack, pw["w2"])
    return out[0, :p].reshape(p, 1)


# ============================================================================
# Parameter init (deterministic, matching the PyTorch module structure)
# ============================================================================
def init_coref_tail_params(key, *, gi_dim, hidden=150,
                           distance_dim=20, genre_dim=20, speaker_dim=20):
    gij_dim = gi_dim * 3 + distance_dim + genre_dim + speaker_dim
    ks = jax.random.split(key, 15)

    def lin_w(k, fi, fo):
        return jax.random.normal(k, (fi, fo), jnp.float32) / jnp.sqrt(fi)

    def lin_b(k, fo):
        return 0.1 * jax.random.normal(k, (1, fo), jnp.float32)

    # MentionScore.score : Score(gi_dim)
    mention = (
        lin_w(ks[0], gi_dim, hidden), lin_b(ks[1], hidden),
        lin_w(ks[2], hidden, hidden), lin_b(ks[3], hidden),
        lin_w(ks[4], hidden, 1).reshape(1, hidden), lin_b(ks[5], 1),
    )

    # PairwiseScore: Score(gij_dim) + Distance / Genre / Speaker tables.
    pairwise = dict(
        w1_full=lin_w(ks[6], gij_dim, hidden),
        b1=lin_b(ks[7], hidden),
        w2=lin_w(ks[8], hidden, hidden),
        b2=lin_b(ks[9], hidden),
        w3_row=lin_w(ks[10], hidden, 1).reshape(1, hidden),
        b3=lin_b(ks[11], 1),
        e_dist=jax.random.normal(ks[12], (DIST_VOCAB, distance_dim), jnp.float32),
        e_genre=jax.random.normal(ks[13], (GENRE_VOCAB, genre_dim), jnp.float32).at[0].set(0.0),
        e_spk=jax.random.normal(ks[14], (SPEAKER_VOCAB, speaker_dim), jnp.float32).at[0].set(0.0),
    )
    return mention, pairwise


# ============================================================================
if __name__ == "__main__":
    key = jax.random.PRNGKey(0)
    k_par, k_g, k_dist, k_genre, k_spk = jax.random.split(key, 5)

    # Small shapes consistent with CorefScore:
    #   hidden_dim=32 -> attn_dim=64, embeds_dim=40, distance/genre/speaker dim=20
    hidden_dim = 32
    embeds_dim = 40
    distance_dim = genre_dim = speaker_dim = 20
    attn_dim = 2 * hidden_dim
    gi_dim = attn_dim * 2 + embeds_dim + distance_dim      # 188
    score_hidden = 150                                     # Score() default

    M = 40                                                 # pruned mentions
    K = 10                                                 # max antecedents per mention

    mention_params, pairwise_params = init_coref_tail_params(
        k_par, gi_dim=gi_dim, hidden=score_hidden,
        distance_dim=distance_dim, genre_dim=genre_dim, speaker_dim=speaker_dim)

    # Stand-in for the span representations g_i produced by MentionScore
    # (the encoder / span-attention pipeline is not part of these kernels).
    g_i = jax.random.normal(k_g, (M, gi_dim), jnp.float32)

    # Unary mention scores via the Pallas Score kernel (single fat grid step).
    mention_scores = score_forward(g_i, mention_params)

    # Build (mention, antecedent) pairs exactly like PairwiseScore: up to K previous spans.
    m_ids, a_ids = [], []
    for i in range(M):
        for j in range(max(0, i - K), i):
            m_ids.append(i)
            a_ids.append(j)
    mention_ids = jnp.asarray(m_ids, jnp.int32)
    antecedent_ids = jnp.asarray(a_ids, jnp.int32)
    P = mention_ids.shape[0]                               # 345 pairs

    # Per-pair features: raw token distances (Distance.stoi binning is folded
    # into the packed phi ids), document genre id, speaker-pair label in {0,1,2}.
    raw_distances = jax.random.randint(k_dist, (P,), 0, 100, dtype=jnp.int32)
    genre_id = jax.random.randint(k_genre, (), 0, GENRE_VOCAB, dtype=jnp.int32)
    genre_ids = jnp.full((P,), genre_id, dtype=jnp.int32)
    speaker_ids = jax.random.randint(k_spk, (P,), 0, SPEAKER_VOCAB, dtype=jnp.int32)

    coref_scores = pairwise_coref_forward(
        g_i, mention_scores, mention_ids, antecedent_ids,
        raw_distances, genre_ids, speaker_ids, pairwise_params,
        distance_dim=distance_dim, genre_dim=genre_dim, speaker_dim=speaker_dim)
    coref_scores = jax.block_until_ready(coref_scores)
    mention_scores = jax.block_until_ready(mention_scores)

    # ---- pure-JAX reference (same math as the PyTorch modules) ----
    def ref_score_mlp(x, p):
        w1, b1, w2, b2, w3_row, b3 = p
        h1 = jax.nn.relu(x @ w1 + b1)
        h2 = jax.nn.relu(h1 @ w2 + b2)
        return h2 @ w3_row.T + b3

    ref_mention = ref_score_mlp(g_i, mention_params)

    bins = jnp.asarray(DIST_BINS)
    dist_bin = jnp.sum(raw_distances[:, None] >= bins[None, :], axis=1)
    phi = jnp.concatenate([pairwise_params["e_dist"][dist_bin],
                           pairwise_params["e_genre"][genre_ids],
                           pairwise_params["e_spk"][speaker_ids]], axis=1)
    ig = g_i[mention_ids]
    jg = g_i[antecedent_ids]
    pairs_feat = jnp.concatenate([ig, jg, ig * jg, phi], axis=1)
    pw = pairwise_params
    s_ij_ref = ref_score_mlp(pairs_feat, (pw["w1_full"], pw["b1"], pw["w2"],
                                          pw["b2"], pw["w3_row"], pw["b3"]))
    ref_coref = ref_mention[mention_ids] + ref_mention[antecedent_ids] + s_ij_ref

    assert mention_scores.shape == (M, 1), mention_scores.shape
    assert coref_scores.shape == (P, 1), coref_scores.shape
    assert jnp.allclose(mention_scores, ref_mention, atol=2e-2, rtol=2e-2), \
        "mention Score kernel mismatch vs reference"
    assert jnp.allclose(coref_scores, ref_coref, atol=2e-2, rtol=2e-2), \
        "fused pairwise coref kernel mismatch vs reference"

    # TODO(synk): the ragged per-mention softmax over antecedents (+ epsilon) and
    # the span bookkeeping (attr.evolve / pruning) are data-dependent host logic
    # and are left outside the kernels.
    print("KERNEL_OK")
</pallas_src>

<mosaic_0001>
module attributes {stable_mosaic.version = 11 : i64} {
  func.func @_score_mlp_kernel(%arg0: i32, %arg1: memref<128x188xf32, #tpu.memory_space<vmem>>, %arg2: memref<188x150xf32, #tpu.memory_space<vmem>>, %arg3: memref<150x150xf32, #tpu.memory_space<vmem>>, %arg4: memref<3x150xf32, #tpu.memory_space<vmem>>, %arg5: memref<1x1xf32, #tpu.memory_space<vmem>>, %arg6: memref<1x128xf32, #tpu.memory_space<vmem>>) attributes {dimension_semantics = [#tpu.dimension_semantics<parallel>], iteration_bounds = array<i64: 1>, scalar_prefetch = 0 : i64, scratch_operands = 0 : i64, tpu.core_type = #tpu.core_type<tc>, window_params = [{transform_indices = @transform_0, window_bounds = array<i64: 128, 188>}, {pipeline_mode = #tpu.pipeline_mode<synchronous>, transform_indices = @transform_1, window_bounds = array<i64: 188, 150>}, {pipeline_mode = #tpu.pipeline_mode<synchronous>, transform_indices = @transform_2, window_bounds = array<i64: 150, 150>}, {pipeline_mode = #tpu.pipeline_mode<synchronous>, transform_indices = @transform_3, window_bounds = array<i64: 3, 150>}, {pipeline_mode = #tpu.pipeline_mode<synchronous>, transform_indices = @transform_4, window_bounds = array<i64: 1, 1>}, {transform_indices = @transform_5, window_bounds = array<i64: 1, 128>}]} {
    %c0 = arith.constant 0 : index
    %c0_0 = arith.constant 0 : index
    %0 = vector.load %arg1[%c0, %c0_0] : memref<128x188xf32, #tpu.memory_space<vmem>>, vector<128x188xf32>
    %c0_1 = arith.constant 0 : index
    %c0_2 = arith.constant 0 : index
    %1 = vector.load %arg2[%c0_1, %c0_2] : memref<188x150xf32, #tpu.memory_space<vmem>>, vector<188x150xf32>
    %cst = arith.constant dense<0.000000e+00> : vector<128x150xf32>
    %2 = tpu.matmul %0, %1, %cst {dimension_numbers = #tpu.dot_dimension_numbers<[1], [0], [0], [1], [0, 0, 1, 1], [], []>} : vector<128x188xf32>, vector<188x150xf32>, vector<128x150xf32> -> vector<128x150xf32>
    %c0_3 = arith.constant 0 : index
    %c0_4 = arith.constant 0 : index
    %3 = vector.load %arg4[%c0_3, %c0_4] : memref<3x150xf32, #tpu.memory_space<vmem>>, vector<1x150xf32>
    %4 = vector.broadcast %3 : vector<1x150xf32> to vector<128x150xf32>
    %5 = arith.addf %2, %4 : vector<128x150xf32>
    %cst_5 = arith.constant 0.000000e+00 : f32
    %6 = vector.broadcast %cst_5 : f32 to vector<128x150xf32>
    %7 = arith.maximumf %5, %6 : vector<128x150xf32>
    %c0_6 = arith.constant 0 : index
    %c0_7 = arith.constant 0 : index
    %8 = vector.load %arg3[%c0_6, %c0_7] : memref<150x150xf32, #tpu.memory_space<vmem>>, vector<150x150xf32>
    %cst_8 = arith.constant dense<0.000000e+00> : vector<128x150xf32>
    %9 = tpu.matmul %7, %8, %cst_8 {dimension_numbers = #tpu.dot_dimension_numbers<[1], [0], [0], [1], [0, 0, 1, 1], [], []>} : vector<128x150xf32>, vector<150x150xf32>, vector<128x150xf32> -> vector<128x150xf32>
    %c1 = arith.constant 1 : index
    %c0_9 = arith.constant 0 : index
    %10 = vector.load %arg4[%c1, %c0_9] : memref<3x150xf32, #tpu.memory_space<vmem>>, vector<1x150xf32>
    %11 = vector.broadcast %10 : vector<1x150xf32> to vector<128x150xf32>
    %12 = arith.addf %9, %11 : vector<128x150xf32>
    %cst_10 = arith.constant 0.000000e+00 : f32
    %13 = vector.broadcast %cst_10 : f32 to vector<128x150xf32>
    %14 = arith.maximumf %12, %13 : vector<128x150xf32>
    %c2 = arith.constant 2 : index
    %c0_11 = arith.constant 0 : index
    %15 = vector.load %arg4[%c2, %c0_11] : memref<3x150xf32, #tpu.memory_space<vmem>>, vector<1x150xf32>
    %cst_12 = arith.constant dense<0.000000e+00> : vector<1x128xf32>
    %16 = tpu.matmul %15, %14, %cst_12 {dimension_numbers = #tpu.dot_dimension_numbers<[1], [1], [0], [0], [0, 0, 1, 0], [], []>} : vector<1x150xf32>, vector<128x150xf32>, vector<1x128xf32> -> vector<1x128xf32>
    %c0_13 = arith.constant 0 : index
    %c0_14 = arith.constant 0 : index
    %17 = vector.load %arg5[%c0_13, %c0_14] : memref<1x1xf32, #tpu.memory_space<vmem>>, vector<1x1xf32>
    %18 = vector.broadcast %17 : vector<1x1xf32> to vector<1x128xf32>
    %19 = arith.addf %16, %18 : vector<1x128xf32>
    %c0_15 = arith.constant 0 : index
    %c0_16 = arith.constant 0 : index
    %20 = vector.load %arg6[%c0_15, %c0_16] : memref<1x128xf32, #tpu.memory_space<vmem>>, vector<1x128xf32>
    tpu.vector_store %arg6[%c0_15, %c0_16], %19 {strides = array<i32>} : memref<1x128xf32, #tpu.memory_space<vmem>>, vector<1x128xf32>,
    return
  }
  func.func @transform_0(%arg0: i32) -> (i32, i32) {
    %c0_i32 = arith.constant 0 : i32
    %c0_i32_0 = arith.constant 0 : i32
    return %arg0, %c0_i32 : i32, i32
  }
  func.func @transform_1(%arg0: i32) -> (i32, i32) {
    %c0_i32 = arith.constant 0 : i32
    %c0_i32_0 = arith.constant 0 : i32
    %c0_i32_1 = arith.constant 0 : i32
    return %c0_i32, %c0_i32_0 : i32, i32
  }
  func.func @transform_2(%arg0: i32) -> (i32, i32) {
    %c0_i32 = arith.constant 0 : i32
    %c0_i32_0 = arith.constant 0 : i32
    %c0_i32_1 = arith.constant 0 : i32
    return %c0_i32, %c0_i32_0 : i32, i32
  }
  func.func @transform_3(%arg0: i32) -> (i32, i32) {
    %c0_i32 = arith.constant 0 : i32
    %c0_i32_0 = arith.constant 0 : i32
    %c0_i32_1 = arith.constant 0 : i32
    return %c0_i32, %c0_i32_0 : i32, i32
  }
  func.func @transform_4(%arg0: i32) -> (i32, i32) {
    %c0_i32 = arith.constant 0 : i32
    %c0_i32_0 = arith.constant 0 : i32
    %c0_i32_1 = arith.constant 0 : i32
    return %c0_i32, %c0_i32_0 : i32, i32
  }
  func.func @transform_5(%arg0: i32) -> (i32, i32) {
    %c0_i32 = arith.constant 0 : i32
    %c0_i32_0 = arith.constant 0 : i32
    return %c0_i32, %arg0 : i32, i32
  }
}

</mosaic_0001>

<llo_original>
// kernel: tpu_custom_call.1
$region0: #{tpu_custom_call.1}
  #allocation0 [shape = 'u32[]', space=smem, size = 0x4, offset = 0x4, fixed_abs, tag = 'smem constant byte address 0x4 - core index']
  #allocation1 [shape = 'u32[144,128]{1,0:T(1,128)}', space=vmem, size = 0x12000, scoped, tag = 'internal scratch']
  #allocation2 [shape = 'f32[1,1]{1,0:T(1,128)S(1)}', space=vmem, size = 0x200, scoped, tag = 'scoped memory for tpu_custom_call.1']
  %s0 = inlined_call_operand.vmem [shape: f32[128,188], index: 0, kind: input, shape index: {}]
  %s1 = inlined_call_operand.vmem [shape: f32[188,150], index: 1, kind: input, shape index: {}]
  %s2 = inlined_call_operand.vmem [shape: f32[150,150], index: 2, kind: input, shape index: {}]
  %s3 = inlined_call_operand.vmem [shape: f32[3,150], index: 3, kind: input, shape index: {}]
  %s4 = inlined_call_operand.<no memory space> [shape: f32[1,1], index: 4, kind: input, shape index: {}]
  %s5 = inlined_call_operand.hbm [shape: f32[1,128], index: 5, kind: output, shape index: {}]
  %s6 = sld [smem:[#allocation0]]
  $region30: #{tpu_custom_call.1} parent=0
    _
  %s8 = ssub.s32 1, %s6
  %s9 = scalar_select 0, %s8, %s6
  %v10 = vstv %s4
  %11 = vst [vmem:[#allocation2] sm:$0x1] %v10
  $region1: #{tpu_custom_call.1} parent=0
    #allocation3 [shape = 'u8[512]{0}', space=vmem, size = 0x400, scoped, tag = 'output window, operand 0, single buffered']
    #allocation4 [shape = 's32[1]{0}', space=sflag, size = 0x4, scoped, tag = 'scoped memory for tpu_custom_call.1']
    %12 = vsyncpa [#allocation4], 0
    // Predicated region
    $region2: #{tpu_custom_call.1} parent=1 // pred_check
      _
    $region3: #{tpu_custom_call.1} parent=1 // pred_check_branch
      %14 = sbr.rel (0) target = $region5
    $region4: #{tpu_custom_call.1} parent=1 // pred_region
      _
    $region5: #{tpu_custom_call.1} parent=1 // pred_fallthru
      _
    // Predicated region
    $region6: #{tpu_custom_call.1} parent=1 // pred_check
      _
    $region7: #{tpu_custom_call.1} parent=1 // pred_check_branch
      %16 = sbr.rel (0) target = $region9
    $region8: #{tpu_custom_call.1} parent=1 // pred_region
      _
    $region9: #{tpu_custom_call.1} parent=1 // pred_fallthru
      _
    // Predicated region
    $region10: #{tpu_custom_call.1} parent=1 // pred_check
      _
    $region11: #{tpu_custom_call.1} parent=1 // pred_check_branch
      %18 = sbr.rel (0) target = $region13
    $region12: #{tpu_custom_call.1} parent=1 // pred_region
      _
    $region13: #{tpu_custom_call.1} parent=1 // pred_fallthru
      _
    // Predicated region
    $region14: #{tpu_custom_call.1} parent=1 // pred_check
      _
    $region15: #{tpu_custom_call.1} parent=1 // pred_check_branch
      %20 = sbr.rel (0) target = $region17
    $region16: #{tpu_custom_call.1} parent=1 // pred_region
      _
    $region17: #{tpu_custom_call.1} parent=1 // pred_fallthru
      _
    // Predicated region
    $region18: #{tpu_custom_call.1} parent=1 // pred_check
      _
    $region19: #{tpu_custom_call.1} parent=1 // pred_check_branch
      %22 = sbr.rel (0) target = $region21
    $region20: #{tpu_custom_call.1} parent=1 // pred_region
      _
    $region21: #{tpu_custom_call.1} parent=1 // pred_fallthru
      _
    %v23 = vld [vmem:[%s0] sm:$0xff]
    %v24 = vld [vmem:[%s0 + $0x8] sm:$0xff]
    %v25 = vld [vmem:[%s0 + $0x10] sm:$0xff]
    %v26 = vld [vmem:[%s0 + $0x18] sm:$0xff]
    %v27 = vld [vmem:[%s0 + $0x20] sm:$0xff]
    %v28 = vld [vmem:[%s0 + $0x28] sm:$0xff]
    %v29 = vld [vmem:[%s0 + $0x30] sm:$0xff]
    %v30 = vld [vmem:[%s0 + $0x38] sm:$0xff]
    %v31 = vld [vmem:[%s0 + $0x40] sm:$0xff]
    %v32 = vld [vmem:[%s0 + $0x48] sm:$0xff]
    %v33 = vld [vmem:[%s0 + $0x50] sm:$0xff]
    %v34 = vld [vmem:[%s0 + $0x58] sm:$0xff]
    %v35 = vld [vmem:[%s0 + $0x60] sm:$0xff]
    %v36 = vld [vmem:[%s0 + $0x68] sm:$0xff]
    %v37 = vld [vmem:[%s0 + $0x70] sm:$0xff]
    %v38 = vld [vmem:[%s0 + $0x78] sm:$0xff]
    %v39 = vld [vmem:[%s0 + $0x80] sm:$0xff]
    %v40 = vld [vmem:[%s0 + $0x88] sm:$0xff]
    %v41 = vld [vmem:[%s0 + $0x90] sm:$0xff]
    %v42 = vld [vmem:[%s0 + $0x98] sm:$0xff]
    %v43 = vld [vmem:[%s0 + $0xa0] sm:$0xff]
    %v44 = vld [vmem:[%s0 + $0xa8] sm:$0xff]
    %v45 = vld [vmem:[%s0 + $0xb0] sm:$0xff]
    %v46 = vld [vmem:[%s0 + $0xb8] sm:$0xff]
    %v47 = vld [vmem:[%s0 + $0xc0] sm:$0xff]
    %v48 = vld [vmem:[%s0 + $0xc8] sm:$0xff]
    %v49 = vld [vmem:[%s0 + $0xd0] sm:$0xff]
    %v50 = vld [vmem:[%s0 + $0xd8] sm:$0xff]
    %v51 = vld [vmem:[%s0 + $0xe0] sm:$0xff]
    %v52 = vld [vmem:[%s0 + $0xe8] sm:$0xff]
    %v53 = vld [vmem:[%s0 + $0xf0] sm:$0xff]
    %v54 = vld [vmem:[%s0 + $0xf8] sm:$0xff]
    %v55 = vld [vmem:[%s1] sm:$0xff]
    %v56 = vld [vmem:[%s1 + $0x8] sm:$0xff]
    %v57 = vld [vmem:[%s1 + $0x10] sm:$0xff]
    %v58 = vld [vmem:[%s1 + $0x18] sm:$0xff]
    %v59 = vld [vmem:[%s1 + $0x20] sm:$0xff]
    %v60 = vld [vmem:[%s1 + $0x28] sm:$0xff]
    %v61 = vld [vmem:[%s1 + $0x30] sm:$0xff]
    %v62 = vld [vmem:[%s1 + $0x38] sm:$0xff]
    %v63 = vld [vmem:[%s1 + $0x40] sm:$0xff]
    %v64 = vld [vmem:[%s1 + $0x48] sm:$0xff]
    %v65 = vld [vmem:[%s1 + $0x50] sm:$0xff]
    %v66 = vld [vmem:[%s1 + $0x58] sm:$0xff]
    %v67 = vld [vmem:[%s1 + $0x60] sm:$0xff]
    %v68 = vld [vmem:[%s1 + $0x68] sm:$0xff]
    %v69 = vld [vmem:[%s1 + $0x70] sm:$0xff]
    %v70 = vld [vmem:[%s1 + $0x78] sm:$0xff]
    %v71 = vld [vmem:[%s1 + $0x80] sm:$0xff]
    %v72 = vld [vmem:[%s1 + $0x88] sm:$0xff]
    %v73 = vld [vmem:[%s1 + $0x90] sm:$0xff]
    %v74 = vld [vmem:[%s1 + $0x98] sm:$0xff]
    %v75 = vld [vmem:[%s1 + $0xa0] sm:$0xff]
    %v76 = vld [vmem:[%s1 + $0xa8] sm:$0xff]
    %v77 = vld [vmem:[%s1 + $0xb0] sm:$0xff]
    %v78 = vld [vmem:[%s1 + $0xb8] sm:$0xff]
    %v79 = vld [vmem:[%s1 + $0xc0] sm:$0xff]
    %v80 = vld [vmem:[%s1 + $0xc8] sm:$0xff]
    %v81 = vld [vmem:[%s1 + $0xd0] sm:$0xff]
    %v82 = vld [vmem:[%s1 + $0xd8] sm:$0xff]
    %v83 = vld [vmem:[%s1 + $0xe0] sm:$0xff]
    %v84 = vld [vmem:[%s1 + $0xe8] sm:$0xff]
    %v85 = vld [vmem:[%s1 + $0xf0] sm:$0xff]
    %v86 = vld [vmem:[%s1 + $0xf8] sm:$0xff]
    %v87 = vld [vmem:[%s1 + $0x100] sm:$0xff]
    %v88 = vld [vmem:[%s1 + $0x108] sm:$0xff]
    %v89 = vld [vmem:[%s1 + $0x110] sm:$0xff]
    %v90 = vld [vmem:[%s1 + $0x118] sm:$0xff]
    %v91 = vld [vmem:[%s1 + $0x120] sm:$0xff]
    %v92 = vld [vmem:[%s1 + $0x128] sm:$0xff]
    %v93 = vld [vmem:[%s1 + $0x130] sm:$0xff]
    %v94 = vld [vmem:[%s1 + $0x138] sm:$0xff]
    %v95 = vld [vmem:[%s1 + $0x140] sm:$0xff]
    %v96 = vld [vmem:[%s1 + $0x148] sm:$0xff]
    %v97 = vld [vmem:[%s1 + $0x150] sm:$0xff]
    %v98 = vld [vmem:[%s1 + $0x158] sm:$0xff]
    %v99 = vld [vmem:[%s1 + $0x160] sm:$0xff]
    %v100 = vld [vmem:[%s1 + $0x168] sm:$0xff]
    %v101 = vld [vmem:[%s1 + $0x170] sm:$0xf]
    %v102 = vld [vmem:[%s1 + $0x178] sm:$0xf]
    %v103 = vld [vmem:[%s3] ss:$4 sm:$0x3]
    %v105 = vlaneseq
    %v106 = vshrl.u32 %v105, 7
    %v107 = vsub.s32 0, %v106
    %v108 = vrot.slane %v103, %v107
    %v109 = vlaneseq
    %v110 = vshrl.u32 %v109, 7
    %v111 = vsub.s32 1, %v110
    %v112 = vrot.slane %v103, %v111
    %vm115 = vcmask 490496
    %v117 = vsel %vm115, %v24, 0
    %v120 = vsel %vm115, %v26, 0
    %v123 = vsel %vm115, %v28, 0
    %v126 = vsel %vm115, %v30, 0
    %v129 = vsel %vm115, %v32, 0
    %v132 = vsel %vm115, %v34, 0
    %v135 = vsel %vm115, %v36, 0
    %v138 = vsel %vm115, %v38, 0
    %v141 = vsel %vm115, %v40, 0
    %v144 = vsel %vm115, %v42, 0
    %v147 = vsel %vm115, %v44, 0
    %v150 = vsel %vm115, %v46, 0
    %v153 = vsel %vm115, %v48, 0
    %v156 = vsel %vm115, %v50, 0
    %v159 = vsel %vm115, %v52, 0
    %v162 = vsel %vm115, %v54, 0
    %vm164 = vcmask 1043456
    %v166 = vsel %vm164, %v101, 0
    %v169 = vsel %vm164, %v102, 0
    %171 = vmatprep.subr.mxu0 %v86
    %172 = vmatpush1.msra.mxu0 %v85
    %173 = vmatprep.subr.mxu0 %v84
    %174 = vmatpush1.msra.mxu0 %v83
    %175 = vmatprep.subr.mxu0 %v82
    %176 = vmatpush1.msra.mxu0 %v81
    %177 = vmatprep.subr.mxu0 %v80
    %178 = vmatpush1.msra.mxu0 %v79
    %179 = vmatprep.subr.mxu0 %v78
    %180 = vmatpush1.msra.mxu0 %v77
    %181 = vmatprep.subr.mxu0 %v76
    %182 = vmatpush1.msra.mxu0 %v75
    %183 = vmatprep.subr.mxu0 %v74
    %184 = vmatpush1.msra.mxu0 %v73
    %185 = vmatprep.subr.mxu0 %v72
    %186 = vmatpush1.msra.mxu0 %v71
    %187 = vmatprep.subr.mxu0 %v70
    %188 = vmatpush1.msra.mxu0 %v69
    %189 = vmatprep.subr.mxu0 %v68
    %190 = vmatpush1.msra.mxu0 %v67
    %191 = vmatprep.subr.mxu0 %v66
    %192 = vmatpush1.msra.mxu0 %v65
    %193 = vmatprep.subr.mxu0 %v64
    %194 = vmatpush1.msra.mxu0 %v63
    %195 = vmatprep.subr.mxu0 %v62
    %196 = vmatpush1.msra.mxu0 %v61
    %197 = vmatprep.subr.mxu0 %v60
    %198 = vmatpush1.msra.mxu0 %v59
    %199 = vmatprep.subr.mxu0 %v58
    %200 = vmatpush1.msra.mxu0 %v57
    %201 = vmatprep.subr.mxu0 %v56
    %202 = vmatpush1.msra.mxu0 %v55
    %203 = vmatprep.subr.mxu0 0.0
    %204 = vmatpush2.msra.mxu0 0.0
    %205 = vmatprep.subr.mxu0 0.0
    %206 = vmatpush2.msra.mxu0 0.0
    %207 = vmatprep.subr.mxu0 0.0
    %208 = vmatpush2.msra.mxu0 0.0
    %209 = vmatprep.subr.mxu0 0.0
    %210 = vmatpush2.msra.mxu0 0.0
    %211 = vmatprep.subr.mxu0 0.0
    %212 = vmatpush2.msra.mxu0 0.0
    %213 = vmatprep.subr.mxu0 0.0
    %214 = vmatpush2.msra.mxu0 0.0
    %215 = vmatprep.subr.mxu0 0.0
    %216 = vmatpush2.msra.mxu0 0.0
    %217 = vmatprep.subr.mxu0 0.0
    %218 = vmatpush2.msra.mxu0 0.0
    %219 = vmatprep.subr.mxu0 %v169
    %220 = vmatpush2.msra.mxu0 %v166
    %221 = vmatprep.subr.mxu0 %v100
    %222 = vmatpush2.msra.mxu0 %v99
    %223 = vmatprep.subr.mxu0 %v98
    %224 = vmatpush2.msra.mxu0 %v97
    %225 = vmatprep.subr.mxu0 %v96
    %226 = vmatpush2.msra.mxu0 %v95
    %227 = vmatprep.subr.mxu0 %v94
    %228 = vmatpush2.msra.mxu0 %v93
    %229 = vmatprep.subr.mxu0 %v92
    %230 = vmatpush2.msra.mxu0 %v91
    %231 = vmatprep.subr.mxu0 %v90
    %232 = vmatpush2.msra.mxu0 %v89
    %233 = vmatprep.subr.mxu0 %v88
    %234 = vmatpush2.msra.mxu0 %v87
    %235 = vmatprep.mubr.f32.mxu0 %v117
    %236 = vmatmul.mubr.f32.gmra.mxu0 %v23
    %v237 = vpop.f32.mrf.mxu0
    %v238 = vadd.f32 %v108, %v237
    %v239 = vpop.f32.mrf.mxu0
    %v240 = vadd.f32 %v112, %v239
    %241 = vmatprep.mubr.f32.mxu0 %v120
    %242 = vmatmul.mubr.f32.gmra.mxu0 %v25
    %v243 = vpop.f32.mrf.mxu0
    %v244 = vadd.f32 %v108, %v243
    %v245 = vpop.f32.mrf.mxu0
    %v246 = vadd.f32 %v112, %v245
    %247 = vmatprep.mubr.f32.mxu0 %v123
    %248 = vmatmul.mubr.f32.gmra.mxu0 %v27
    %v249 = vpop.f32.mrf.mxu0
    %v250 = vadd.f32 %v108, %v249
    %v251 = vpop.f32.mrf.mxu0
    %v252 = vadd.f32 %v112, %v251
    %253 = vmatprep.mubr.f32.mxu0 %v126
    %254 = vmatmul.mubr.f32.gmra.mxu0 %v29
    %v255 = vpop.f32.mrf.mxu0
    %v256 = vadd.f32 %v108, %v255
    %v257 = vpop.f32.mrf.mxu0
    %v258 = vadd.f32 %v112, %v257
    %259 = vmatprep.mubr.f32.mxu0 %v129
    %260 = vmatmul.mubr.f32.gmra.mxu0 %v31
    %v261 = vpop.f32.mrf.mxu0
    %v262 = vadd.f32 %v108, %v261
    %v263 = vpop.f32.mrf.mxu0
    %v264 = vadd.f32 %v112, %v263
    %265 = vmatprep.mubr.f32.mxu0 %v132
    %266 = vmatmul.mubr.f32.gmra.mxu0 %v33
    %v267 = vpop.f32.mrf.mxu0
    %v268 = vadd.f32 %v108, %v267
    %v269 = vpop.f32.mrf.mxu0
    %v270 = vadd.f32 %v112, %v269
    %271 = vmatprep.mubr.f32.mxu0 %v135
    %272 = vmatmul.mubr.f32.gmra.mxu0 %v35
    %v273 = vpop.f32.mrf.mxu0
    %v274 = vadd.f32 %v108, %v273
    %v275 = vpop.f32.mrf.mxu0
    %v276 = vadd.f32 %v112, %v275
    %277 = vmatprep.mubr.f32.mxu0 %v138
    %278 = vmatmul.mubr.f32.gmra.mxu0 %v37
    %v279 = vpop.f32.mrf.mxu0
    %v280 = vadd.f32 %v108, %v279
    %v281 = vpop.f32.mrf.mxu0
    %v282 = vadd.f32 %v112, %v281
    %283 = vmatprep.mubr.f32.mxu0 %v141
    %284 = vmatmul.mubr.f32.gmra.mxu0 %v39
    %v285 = vpop.f32.mrf.mxu0
    %v286 = vadd.f32 %v108, %v285
    %v287 = vpop.f32.mrf.mxu0
    %v288 = vadd.f32 %v112, %v287
    %289 = vmatprep.mubr.f32.mxu0 %v144
    %290 = vmatmul.mubr.f32.gmra.mxu0 %v41
    %v291 = vpop.f32.mrf.mxu0
    %v292 = vadd.f32 %v108, %v291
    %v293 = vpop.f32.mrf.mxu0
    %v294 = vadd.f32 %v112, %v293
    %295 = vmatprep.mubr.f32.mxu0 %v147
    %296 = vmatmul.mubr.f32.gmra.mxu0 %v43
    %v297 = vpop.f32.mrf.mxu0
    %v298 = vadd.f32 %v108, %v297
    %v299 = vpop.f32.mrf.mxu0
    %v300 = vadd.f32 %v112, %v299
    %301 = vmatprep.mubr.f32.mxu0 %v150
    %302 = vmatmul.mubr.f32.gmra.mxu0 %v45
    %v303 = vpop.f32.mrf.mxu0
    %v304 = vadd.f32 %v108, %v303
    %v305 = vpop.f32.mrf.mxu0
    %v306 = vadd.f32 %v112, %v305
    %307 = vmatprep.mubr.f32.mxu0 %v153
    %308 = vmatmul.mubr.f32.gmra.mxu0 %v47
    %v309 = vpop.f32.mrf.mxu0
    %v310 = vadd.f32 %v108, %v309
    %v311 = vpop.f32.mrf.mxu0
    %v312 = vadd.f32 %v112, %v311
    %313 = vmatprep.mubr.f32.mxu0 %v156
    %314 = vmatmul.mubr.f32.gmra.mxu0 %v49
    %v315 = vpop.f32.mrf.mxu0
    %v316 = vadd.f32 %v108, %v315
    %v317 = vpop.f32.mrf.mxu0
    %v318 = vadd.f32 %v112, %v317
    %319 = vmatprep.mubr.f32.mxu0 %v159
    %320 = vmatmul.mubr.f32.gmra.mxu0 %v51
    %v321 = vpop.f32.mrf.mxu0
    %v322 = vadd.f32 %v108, %v321
    %v323 = vpop.f32.mrf.mxu0
    %v324 = vadd.f32 %v112, %v323
    %325 = vmatprep.mubr.f32.mxu0 %v162
    %326 = vmatmul.mubr.f32.gmra.mxu0 %v53
    %v327 = vpop.f32.mrf.mxu0
    %v328 = vadd.f32 %v108, %v327
    %v329 = vpop.f32.mrf.mxu0
    %v330 = vadd.f32 %v112, %v329
    %331 = vdwg.mxu0
    %v332 = vmax.f32 %v238, 0.0
    %v333 = vmax.f32 %v240, 0.0
    %v334 = vmax.f32 %v244, 0.0
    %v335 = vmax.f32 %v246, 0.0
    %v336 = vmax.f32 %v250, 0.0
    %v337 = vmax.f32 %v252, 0.0
    %v338 = vmax.f32 %v256, 0.0
    %v339 = vmax.f32 %v258, 0.0
    %v340 = vmax.f32 %v262, 0.0
    %v341 = vmax.f32 %v264, 0.0
    %v342 = vmax.f32 %v268, 0.0
    %v343 = vmax.f32 %v270, 0.0
    %v344 = vmax.f32 %v274, 0.0
    %v345 = vmax.f32 %v276, 0.0
    %v346 = vmax.f32 %v280, 0.0
    %v347 = vmax.f32 %v282, 0.0
    %v348 = vmax.f32 %v286, 0.0
    %v349 = vmax.f32 %v288, 0.0
    %v350 = vmax.f32 %v292, 0.0
    %v351 = vmax.f32 %v294, 0.0
    %v352 = vmax.f32 %v298, 0.0
    %v353 = vmax.f32 %v300, 0.0
    %v354 = vmax.f32 %v304, 0.0
    %v355 = vmax.f32 %v306, 0.0
    %v356 = vmax.f32 %v310, 0.0
    %v357 = vmax.f32 %v312, 0.0
    %v358 = vmax.f32 %v316, 0.0
    %v359 = vmax.f32 %v318, 0.0
    %v360 = vmax.f32 %v322, 0.0
    %v361 = vmax.f32 %v324, 0.0
    %v362 = vmax.f32 %v328, 0.0
    %v363 = vmax.f32 %v330, 0.0
    %v364 = vld [vmem:[%s2] sm:$0xff]
    %v365 = vld [vmem:[%s2 + $0x8] sm:$0xff]
    %v366 = vld [vmem:[%s2 + $0x10] sm:$0xff]
    %v367 = vld [vmem:[%s2 + $0x18] sm:$0xff]
    %v368 = vld [vmem:[%s2 + $0x20] sm:$0xff]
    %v369 = vld [vmem:[%s2 + $0x28] sm:$0xff]
    %v370 = vld [vmem:[%s2 + $0x30] sm:$0xff]
    %v371 = vld [vmem:[%s2 + $0x38] sm:$0xff]
    %v372 = vld [vmem:[%s2 + $0x40] sm:$0xff]
    %v373 = vld [vmem:[%s2 + $0x48] sm:$0xff]
    %v374 = vld [vmem:[%s2 + $0x50] sm:$0xff]
    %v375 = vld [vmem:[%s2 + $0x58] sm:$0xff]
    %v376 = vld [vmem:[%s2 + $0x60] sm:$0xff]
    %v377 = vld [vmem:[%s2 + $0x68] sm:$0xff]
    %v378 = vld [vmem:[%s2 + $0x70] sm:$0xff]
    %v379 = vld [vmem:[%s2 + $0x78] sm:$0xff]
    %v380 = vld [vmem:[%s2 + $0x80] sm:$0xff]
    %v381 = vld [vmem:[%s2 + $0x88] sm:$0xff]
    %v382 = vld [vmem:[%s2 + $0x90] sm:$0xff]
    %v383 = vld [vmem:[%s2 + $0x98] sm:$0xff]
    %v384 = vld [vmem:[%s2 + $0xa0] sm:$0xff]
    %v385 = vld [vmem:[%s2 + $0xa8] sm:$0xff]
    %v386 = vld [vmem:[%s2 + $0xb0] sm:$0xff]
    %v387 = vld [vmem:[%s2 + $0xb8] sm:$0xff]
    %v388 = vld [vmem:[%s2 + $0xc0] sm:$0xff]
    %v389 = vld [vmem:[%s2 + $0xc8] sm:$0xff]
    %v390 = vld [vmem:[%s2 + $0xd0] sm:$0xff]
    %v391 = vld [vmem:[%s2 + $0xd8] sm:$0xff]
    %v392 = vld [vmem:[%s2 + $0xe0] sm:$0xff]
    %v393 = vld [vmem:[%s2 + $0xe8] sm:$0xff]
    %v394 = vld [vmem:[%s2 + $0xf0] sm:$0xff]
    %v395 = vld [vmem:[%s2 + $0xf8] sm:$0xff]
    %v396 = vld [vmem:[%s2 + $0x100] sm:$0xff]
    %v397 = vld [vmem:[%s2 + $0x108] sm:$0xff]
    %v398 = vld [vmem:[%s2 + $0x110] sm:$0xff]
    %v399 = vld [vmem:[%s2 + $0x118] sm:$0xff]
    %v400 = vld [vmem:[%s2 + $0x120] sm:$0x3f]
    %v401 = vld [vmem:[%s2 + $0x128] sm:$0x3f]
    %s402 = scalar_lea.vmem %s3, 1
    %v403 = vld [vmem:[%s402] ss:$4 sm:$0x3]
    %v405 = vlaneseq
    %v406 = vshrl.u32 %v405, 7
    %v407 = vsub.s32 0, %v406
    %v408 = vrot.slane %v403, %v407
    %v409 = vlaneseq
    %v410 = vshrl.u32 %v409, 7
    %v411 = vsub.s32 1, %v410
    %v412 = vrot.slane %v403, %v411
    %vm415 = vcmask 179200
    %v417 = vsel %vm415, %v333, 0
    %v420 = vsel %vm415, %v335, 0
    %v423 = vsel %vm415, %v337, 0
    %v426 = vsel %vm415, %v339, 0
    %v429 = vsel %vm415, %v341, 0
    %v432 = vsel %vm415, %v343, 0
    %v435 = vsel %vm415, %v345, 0
    %v438 = vsel %vm415, %v347, 0
    %v441 = vsel %vm415, %v349, 0
    %v444 = vsel %vm415, %v351, 0
    %v447 = vsel %vm415, %v353, 0
    %v450 = vsel %vm415, %v355, 0
    %v453 = vsel %vm415, %v357, 0
    %v456 = vsel %vm415, %v359, 0
    %v459 = vsel %vm415, %v361, 0
    %v462 = vsel %vm415, %v363, 0
    %vm464 = vcmask 1045504
    %v466 = vsel %vm464, %v400, 0
    %v469 = vsel %vm464, %v401, 0
    %471 = vmatprep.subr.mxu0 %v395
    %472 = vmatpush1.msra.mxu0 %v394
    %473 = vmatprep.subr.mxu0 %v393
    %474 = vmatpush1.msra.mxu0 %v392
    %475 = vmatprep.subr.mxu0 %v391
    %476 = vmatpush1.msra.mxu0 %v390
    %477 = vmatprep.subr.mxu0 %v389
    %478 = vmatpush1.msra.mxu0 %v388
    %479 = vmatprep.subr.mxu0 %v387
    %480 = vmatpush1.msra.mxu0 %v386
    %481 = vmatprep.subr.mxu0 %v385
    %482 = vmatpush1.msra.mxu0 %v384
    %483 = vmatprep.subr.mxu0 %v383
    %484 = vmatpush1.msra.mxu0 %v382
    %485 = vmatprep.subr.mxu0 %v381
    %486 = vmatpush1.msra.mxu0 %v380
    %487 = vmatprep.subr.mxu0 %v379
    %488 = vmatpush1.msra.mxu0 %v378
    %489 = vmatprep.subr.mxu0 %v377
    %490 = vmatpush1.msra.mxu0 %v376
    %491 = vmatprep.subr.mxu0 %v375
    %492 = vmatpush1.msra.mxu0 %v374
    %493 = vmatprep.subr.mxu0 %v373
    %494 = vmatpush1.msra.mxu0 %v372
    %495 = vmatprep.subr.mxu0 %v371
    %496 = vmatpush1.msra.mxu0 %v370
    %497 = vmatprep.subr.mxu0 %v369
    %498 = vmatpush1.msra.mxu0 %v368
    %499 = vmatprep.subr.mxu0 %v367
    %500 = vmatpush1.msra.mxu0 %v366
    %501 = vmatprep.subr.mxu0 %v365
    %502 = vmatpush1.msra.mxu0 %v364
    %503 = vmatprep.subr.mxu0 0.0
    %504 = vmatpush2.msra.mxu0 0.0
    %505 = vmatprep.subr.mxu0 0.0
    %506 = vmatpush2.msra.mxu0 0.0
    %507 = vmatprep.subr.mxu0 0.0
    %508 = vmatpush2.msra.mxu0 0.0
    %509 = vmatprep.subr.mxu0 0.0
    %510 = vmatpush2.msra.mxu0 0.0
    %511 = vmatprep.subr.mxu0 0.0
    %512 = vmatpush2.msra.mxu0 0.0
    %513 = vmatprep.subr.mxu0 0.0
    %514 = vmatpush2.msra.mxu0 0.0
    %515 = vmatprep.subr.mxu0 0.0
    %516 = vmatpush2.msra.mxu0 0.0
    %517 = vmatprep.subr.mxu0 0.0
    %518 = vmatpush2.msra.mxu0 0.0
    %519 = vmatprep.subr.mxu0 0.0
    %520 = vmatpush2.msra.mxu0 0.0
    %521 = vmatprep.subr.mxu0 0.0
    %522 = vmatpush2.msra.mxu0 0.0
    %523 = vmatprep.subr.mxu0 0.0
    %524 = vmatpush2.msra.mxu0 0.0
    %525 = vmatprep.subr.mxu0 0.0
    %526 = vmatpush2.msra.mxu0 0.0
    %527 = vmatprep.subr.mxu0 0.0
    %528 = vmatpush2.msra.mxu0 0.0
    %529 = vmatprep.subr.mxu0 %v469
    %530 = vmatpush2.msra.mxu0 %v466
    %531 = vmatprep.subr.mxu0 %v399
    %532 = vmatpush2.msra.mxu0 %v398
    %533 = vmatprep.subr.mxu0 %v397
    %534 = vmatpush2.msra.mxu0 %v396
    %535 = vmatprep.mubr.f32.mxu0 %v417
    %536 = vmatmul.mubr.f32.gmra.mxu0 %v332
    %v537 = vpop.f32.mrf.mxu0
    %v538 = vadd.f32 %v408, %v537
    %v539 = vpop.f32.mrf.mxu0
    %v540 = vadd.f32 %v412, %v539
    %541 = vmatprep.mubr.f32.mxu0 %v420
    %542 = vmatmul.mubr.f32.gmra.mxu0 %v334
    %v543 = vpop.f32.mrf.mxu0
    %v544 = vadd.f32 %v408, %v543
    %v545 = vpop.f32.mrf.mxu0
    %v546 = vadd.f32 %v412, %v545
    %547 = vmatprep.mubr.f32.mxu0 %v423
    %548 = vmatmul.mubr.f32.gmra.mxu0 %v336
    %v549 = vpop.f32.mrf.mxu0
    %v550 = vadd.f32 %v408, %v549
    %v551 = vpop.f32.mrf.mxu0
    %v552 = vadd.f32 %v412, %v551
    %553 = vmatprep.mubr.f32.mxu0 %v426
    %554 = vmatmul.mubr.f32.gmra.mxu0 %v338
    %v555 = vpop.f32.mrf.mxu0
    %v556 = vadd.f32 %v408, %v555
    %v557 = vpop.f32.mrf.mxu0
    %v558 = vadd.f32 %v412, %v557
    %559 = vmatprep.mubr.f32.mxu0 %v429
    %560 = vmatmul.mubr.f32.gmra.mxu0 %v340
    %v561 = vpop.f32.mrf.mxu0
    %v562 = vadd.f32 %v408, %v561
    %v563 = vpop.f32.mrf.mxu0
    %v564 = vadd.f32 %v412, %v563
    %565 = vmatprep.mubr.f32.mxu0 %v432
    %566 = vmatmul.mubr.f32.gmra.mxu0 %v342
    %v567 = vpop.f32.mrf.mxu0
    %v568 = vadd.f32 %v408, %v567
    %v569 = vpop.f32.mrf.mxu0
    %v570 = vadd.f32 %v412, %v569
    %571 = vmatprep.mubr.f32.mxu0 %v435
    %572 = vmatmul.mubr.f32.gmra.mxu0 %v344
    %v573 = vpop.f32.mrf.mxu0
    %v574 = vadd.f32 %v408, %v573
    %v575 = vpop.f32.mrf.mxu0
    %v576 = vadd.f32 %v412, %v575
    %577 = vmatprep.mubr.f32.mxu0 %v438
    %578 = vmatmul.mubr.f32.gmra.mxu0 %v346
    %v579 = vpop.f32.mrf.mxu0
    %v580 = vadd.f32 %v408, %v579
    %v581 = vpop.f32.mrf.mxu0
    %v582 = vadd.f32 %v412, %v581
    %583 = vmatprep.mubr.f32.mxu0 %v441
    %584 = vmatmul.mubr.f32.gmra.mxu0 %v348
    %v585 = vpop.f32.mrf.mxu0
    %v586 = vadd.f32 %v408, %v585
    %v587 = vpop.f32.mrf.mxu0
    %v588 = vadd.f32 %v412, %v587
    %589 = vmatprep.mubr.f32.mxu0 %v444
    %590 = vmatmul.mubr.f32.gmra.mxu0 %v350
    %v591 = vpop.f32.mrf.mxu0
    %v592 = vadd.f32 %v408, %v591
    %v593 = vpop.f32.mrf.mxu0
    %v594 = vadd.f32 %v412, %v593
    %595 = vmatprep.mubr.f32.mxu0 %v447
    %596 = vmatmul.mubr.f32.gmra.mxu0 %v352
    %v597 = vpop.f32.mrf.mxu0
    %v598 = vadd.f32 %v408, %v597
    %v599 = vpop.f32.mrf.mxu0
    %v600 = vadd.f32 %v412, %v599
    %601 = vmatprep.mubr.f32.mxu0 %v450
    %602 = vmatmul.mubr.f32.gmra.mxu0 %v354
    %v603 = vpop.f32.mrf.mxu0
    %v604 = vadd.f32 %v408, %v603
    %v605 = vpop.f32.mrf.mxu0
    %v606 = vadd.f32 %v412, %v605
    %607 = vmatprep.mubr.f32.mxu0 %v453
    %608 = vmatmul.mubr.f32.gmra.mxu0 %v356
    %v609 = vpop.f32.mrf.mxu0
    %v610 = vadd.f32 %v408, %v609
    %v611 = vpop.f32.mrf.mxu0
    %v612 = vadd.f32 %v412, %v611
    %613 = vmatprep.mubr.f32.mxu0 %v456
    %614 = vmatmul.mubr.f32.gmra.mxu0 %v358
    %v615 = vpop.f32.mrf.mxu0
    %v616 = vadd.f32 %v408, %v615
    %v617 = vpop.f32.mrf.mxu0
    %v618 = vadd.f32 %v412, %v617
    %619 = vmatprep.mubr.f32.mxu0 %v459
    %620 = vmatmul.mubr.f32.gmra.mxu0 %v360
    %v621 = vpop.f32.mrf.mxu0
    %v622 = vadd.f32 %v408, %v621
    %v623 = vpop.f32.mrf.mxu0
    %v624 = vadd.f32 %v412, %v623
    %625 = vmatprep.mubr.f32.mxu0 %v462
    %626 = vmatmul.mubr.f32.gmra.mxu0 %v362
    %v627 = vpop.f32.mrf.mxu0
    %v628 = vadd.f32 %v408, %v627
    %v629 = vpop.f32.mrf.mxu0
    %v630 = vadd.f32 %v412, %v629
    %631 = vdwg.mxu0
    %v632 = vmax.f32 %v538, 0.0
    %v633 = vmax.f32 %v540, 0.0
    %v634 = vmax.f32 %v544, 0.0
    %v635 = vmax.f32 %v546, 0.0
    %v636 = vmax.f32 %v550, 0.0
    %v637 = vmax.f32 %v552, 0.0
    %v638 = vmax.f32 %v556, 0.0
    %v639 = vmax.f32 %v558, 0.0
    %v640 = vmax.f32 %v562, 0.0
    %v641 = vmax.f32 %v564, 0.0
    %v642 = vmax.f32 %v568, 0.0
    %v643 = vmax.f32 %v570, 0.0
    %v644 = vmax.f32 %v574, 0.0
    %v645 = vmax.f32 %v576, 0.0
    %v646 = vmax.f32 %v580, 0.0
    %v647 = vmax.f32 %v582, 0.0
    %v648 = vmax.f32 %v586, 0.0
    %v649 = vmax.f32 %v588, 0.0
    %v650 = vmax.f32 %v592, 0.0
    %v651 = vmax.f32 %v594, 0.0
    %v652 = vmax.f32 %v598, 0.0
    %v653 = vmax.f32 %v600, 0.0
    %v654 = vmax.f32 %v604, 0.0
    %v655 = vmax.f32 %v606, 0.0
    %v656 = vmax.f32 %v610, 0.0
    %v657 = vmax.f32 %v612, 0.0
    %v658 = vmax.f32 %v616, 0.0
    %v659 = vmax.f32 %v618, 0.0
    %v660 = vmax.f32 %v622, 0.0
    %v661 = vmax.f32 %v624, 0.0
    %v662 = vmax.f32 %v628, 0.0
    %v663 = vmax.f32 %v630, 0.0
    %s664 = scalar_lea.vmem %s3, 2
    %v665 = vld [vmem:[%s664] ss:$4 sm:$0x3]
    %v666 = vld [vmem:[#allocation2] sm:$0x1]
    %668 = vset.pattern.permute.xlu0 0
    %669 = vperm.xlu0 %668, %v666
    %v670 = vpop.permute.xlu0 %669
    %v672 = vlaneseq
    %v673 = vshrl.u32 %v672, 7
    %v674 = vsub.s32 0, %v673
    %v675 = vrot.slane %v670, %v674
    %v677 = vlaneseq
    %v678 = vshrl.u32 %v677, 7
    %v679 = vsub.s32 0, %v678
    %v680 = vrot.slane %v665, %v679
    %v681 = vlaneseq
    %v682 = vshrl.u32 %v681, 7
    %v683 = vsub.s32 1, %v682
    %v684 = vrot.slane %v665, %v683
    %v686 = vsel %vm415, %v684, 0
    %v689 = vsel %vm415, %v633, 0
    %v692 = vsel %vm415, %v635, 0
    %v695 = vsel %vm415, %v637, 0
    %v698 = vsel %vm415, %v639, 0
    %v701 = vsel %vm415, %v641, 0
    %v704 = vsel %vm415, %v643, 0
    %v707 = vsel %vm415, %v645, 0
    %v710 = vsel %vm415, %v647, 0
    %v713 = vsel %vm415, %v649, 0
    %v716 = vsel %vm415, %v651, 0
    %v719 = vsel %vm415, %v653, 0
    %v722 = vsel %vm415, %v655, 0
    %v725 = vsel %vm415, %v657, 0
    %v728 = vsel %vm415, %v659, 0
    %v731 = vsel %vm415, %v661, 0
    %v734 = vsel %vm415, %v663, 0
    %736 = vmatprep.subr.mxu0 %v734
    %737 = vmatpush1.xpose.msra.mxu0 %v662
    %738 = vmatprep.subr.mxu0 %v731
    %739 = vmatpush1.xpose.msra.mxu0 %v660
    %740 = vmatprep.subr.mxu0 %v728
    %741 = vmatpush1.xpose.msra.mxu0 %v658
    %742 = vmatprep.subr.mxu0 %v725
    %743 = vmatpush1.xpose.msra.mxu0 %v656
    %744 = vmatprep.subr.mxu0 %v722
    %745 = vmatpush1.xpose.msra.mxu0 %v654
    %746 = vmatprep.subr.mxu0 %v719
    %747 = vmatpush1.xpose.msra.mxu0 %v652
    %748 = vmatprep.subr.mxu0 %v716
    %749 = vmatpush1.xpose.msra.mxu0 %v650
    %750 = vmatprep.subr.mxu0 %v713
    %751 = vmatpush1.xpose.msra.mxu0 %v648
    %752 = vmatprep.subr.mxu0 %v710
    %753 = vmatpush1.xpose.msra.mxu0 %v646
    %754 = vmatprep.subr.mxu0 %v707
    %755 = vmatpush1.xpose.msra.mxu0 %v644
    %756 = vmatprep.subr.mxu0 %v704
    %757 = vmatpush1.xpose.msra.mxu0 %v642
    %758 = vmatprep.subr.mxu0 %v701
    %759 = vmatpush1.xpose.msra.mxu0 %v640
    %760 = vmatprep.subr.mxu0 %v698
    %761 = vmatpush1.xpose.msra.mxu0 %v638
    %762 = vmatprep.subr.mxu0 %v695
    %763 = vmatpush1.xpose.msra.mxu0 %v636
    %764 = vmatprep.subr.mxu0 %v692
    %765 = vmatpush1.xpose.msra.mxu0 %v634
    %766 = vmatprep.subr.mxu0 %v689
    %767 = vmatpush1.xpose.msra.mxu0 %v632
    %768 = vmatprep.subr.mxu0 0.0
    %769 = vmatpush2.xpose.msra.mxu0 0.0
    %770 = vmatprep.subr.mxu0 0.0
    %771 = vmatpush2.xpose.msra.mxu0 0.0
    %772 = vmatprep.subr.mxu0 0.0
    %773 = vmatpush2.xpose.msra.mxu0 0.0
    %774 = vmatprep.subr.mxu0 0.0
    %775 = vmatpush2.xpose.msra.mxu0 0.0
    %776 = vmatprep.subr.mxu0 0.0
    %777 = vmatpush2.xpose.msra.mxu0 0.0
    %778 = vmatprep.subr.mxu0 0.0
    %779 = vmatpush2.xpose.msra.mxu0 0.0
    %780 = vmatprep.subr.mxu0 0.0
    %781 = vmatpush2.xpose.msra.mxu0 0.0
    %782 = vmatprep.subr.mxu0 0.0
    %783 = vmatpush2.xpose.msra.mxu0 0.0
    %784 = vmatprep.subr.mxu0 0.0
    %785 = vmatpush2.xpose.msra.mxu0 0.0
    %786 = vmatprep.subr.mxu0 0.0
    %787 = vmatpush2.xpose.msra.mxu0 0.0
    %788 = vmatprep.subr.mxu0 0.0
    %789 = vmatpush2.xpose.msra.mxu0 0.0
    %790 = vmatprep.subr.mxu0 0.0
    %791 = vmatpush2.xpose.msra.mxu0 0.0
    %792 = vmatprep.subr.mxu0 0.0
    %793 = vmatpush2.xpose.msra.mxu0 0.0
    %794 = vmatprep.subr.mxu0 0.0
    %795 = vmatpush2.xpose.msra.mxu0 0.0
    %796 = vmatprep.subr.mxu0 0.0
    %797 = vmatpush2.xpose.msra.mxu0 0.0
    %798 = vmatprep.subr.mxu0 0.0
    %799 = vmatpush2.xpose.msra.mxu0 0.0
    %800 = vmatprep.mubr.f32.mxu0 %v686
    %801 = vmatmul.mubr.f32.gmra.mxu0 %v680
    %v802 = vpop.f32.mrf.mxu0
    %v803 = vadd.f32 %v675, %v802
    %v804 = vpop.f32.mrf.mxu0
    %805 = vdwg.mxu0
    %806 = vst [vmem:[#allocation3] sm:$0x1] %v803
    // Predicated region
    $region22: #{tpu_custom_call.1} parent=1 // pred_check
      _
    $region23: #{tpu_custom_call.1} parent=1 // pred_check_branch
      %808 = sbr.rel (0) target = $region25
    $region24: #{tpu_custom_call.1} parent=1 // pred_region
      %s810 = ssub.s32 16, 16
      %811 = vsyncadd [#allocation4], %s810
      %s813 = sshll.u32 [#allocation3], 4
      %s814 = int_to_ptr.vmem [resolvable:$true] %s813
      %816 = dma.vmem_to_hbm [thread:$0]  %s814, 16, %s5, [#allocation4]
    $region25: #{tpu_custom_call.1} parent=1 // pred_fallthru
      _
    // Predicated region
    $region26: #{tpu_custom_call.1} parent=1 // pred_check
      _
    $region27: #{tpu_custom_call.1} parent=1 // pred_check_branch
      %818 = sbr.rel (0) target = $region29
    $region28: #{tpu_custom_call.1} parent=1 // pred_region
      %819 = dma.done [#allocation4], 16
    $region29: #{tpu_custom_call.1} parent=1 // pred_fallthru
      _
    %820 = vsyncpa [#allocation4], 1

</llo_original>
